<compile_context>
chip_gen: v7x
topology: tpu7x:2x2x1
jax: 0.10.0
libtpu: 0.0.40
codegen_flags: <defaults>
</compile_context>

<pallas_src>
import functools

import jax
import jax.numpy as jnp
from jax.experimental import pallas as pl
from jax.experimental.pallas import tpu as pltpu


def _round_up(x, m):
    return ((x + m - 1) // m) * m


def _choose_tm(M, compute_dtype, target_tm):
    """Batch tile: large (amortize per-step overhead), sublane-packed,
    and >= 2 grid steps for non-tiny batches so v7x megacore can shard."""
    sub = 16 if jnp.dtype(compute_dtype) == jnp.dtype(jnp.bfloat16) else 8
    tm = _round_up(min(M, target_tm), sub)
    if M >= 256 and pl.cdiv(M, tm) < 2:
        # Split into two tiles so both v7x TensorCores get work.
        tm = _round_up(pl.cdiv(M, 2), sub)
    return tm


# ----------------------------------------------------------------------------
# Fused kernel: entire MLP for one batch tile.
#   refs = (x_ref, w0, b0, w1, b1, ..., w_{L-1}, b_{L-1}, w_last, o_ref)
# ----------------------------------------------------------------------------
def _imgnn_fused_kernel(*refs, num_hidden, compute_dtype):
    x_ref = refs[0]
    w_last_ref = refs[-2]
    o_ref = refs[-1]

    h = x_ref[...].astype(compute_dtype)
    for l in range(num_hidden):
        w_ref = refs[1 + 2 * l]
        b_ref = refs[2 + 2 * l]
        # Single MXU pass with fp32 accumulation; fp32 epilogue (bias + ReLU).
        y = jnp.dot(h, w_ref[...], preferred_element_type=jnp.float32)
        y = y + b_ref[...]                          # (1, N) bias broadcast
        h = jnp.maximum(y, 0.0).astype(compute_dtype)

    y = jnp.dot(h, w_last_ref[...], preferred_element_type=jnp.float32)
    # Row-wise L2 normalize (no epsilon, matches torch.norm + divide).
    rsq = jax.lax.rsqrt(jnp.sum(y * y, axis=1, keepdims=True))
    o_ref[...] = (y * rsq).astype(o_ref.dtype)


# ----------------------------------------------------------------------------
# Wrapper: tile selection, BlockSpecs, single pallas_call
# ----------------------------------------------------------------------------
def imgnn_forward(
    x,
    hidden_params,
    w_last,
    *,
    compute_dtype=jnp.bfloat16,
    target_tm=1024,
    tm=None,
):
    """x:(M, input_dim); hidden_params: list of (W:(in,out), b:(out,));
    w_last:(mid, output_dim). Returns (M, output_dim) fp32."""
    x = x.astype(jnp.float32)
    M, K = x.shape
    num_hidden = len(hidden_params)
    N_out = w_last.shape[1]

    if tm is None:
        tm = _choose_tm(M, compute_dtype, target_tm)

    # Only pad the batch when a single tile exceeds it (tiny batches). For
    # large ragged batches we use an uneven (cdiv) grid: Pallas clips the
    # boundary DMAs, garbage tail rows are row-independent and never stored.
    x_k = x.astype(compute_dtype)
    if M < tm:
        rows = tm
        x_k = jnp.zeros((rows, K), compute_dtype).at[:M, :].set(x_k)
    else:
        rows = M

    # Assemble inputs + specs: x is tiled over batch; every weight/bias uses a
    # full-extent block with a constant index_map (stays resident in VMEM).
    # (If profiling shows exposed x-DMA at very large M, add
    #  pipeline_mode=pl.Buffered(3) to the x BlockSpec only.)
    inputs = [x_k]
    in_specs = [pl.BlockSpec((tm, K), lambda i: (i, 0))]
    for (w, b) in hidden_params:
        kin, kout = w.shape
        inputs.append(w.astype(compute_dtype))
        in_specs.append(pl.BlockSpec((kin, kout), lambda i: (0, 0)))
        inputs.append(b.reshape(1, kout).astype(jnp.float32))
        in_specs.append(pl.BlockSpec((1, kout), lambda i: (0, 0)))
    inputs.append(w_last.astype(compute_dtype))
    in_specs.append(pl.BlockSpec(w_last.shape, lambda i: (0, 0)))

    # Derive a VMEM limit from the per-tile footprint (double-buffered x/out,
    # resident weights, fp32 activation temporaries) + headroom; cap at 48 MiB
    # (well below v7x's 64 MiB physical VMEM, fine on v5e/v6e too).
    itemsize = jnp.dtype(compute_dtype).itemsize
    w_bytes = sum(w.size * itemsize + b.size * 4 for w, b in hidden_params)
    w_bytes += w_last.size * itemsize
    max_width = max([w.shape[1] for w, _ in hidden_params] + [N_out, K])
    vmem_est = (
        2 * (tm * K * itemsize)          # x tile, double-buffered
        + 2 * (tm * N_out * 4)           # out tile, double-buffered
        + 2 * w_bytes                    # resident weights/biases
        + 6 * tm * max_width * 4         # fp32 in-kernel temporaries
    )
    vmem_limit = int(min(max(vmem_est + (4 << 20), 16 << 20), 48 << 20))

    kernel = functools.partial(
        _imgnn_fused_kernel, num_hidden=num_hidden, compute_dtype=compute_dtype
    )

    out = pl.pallas_call(
        kernel,
        out_shape=jax.ShapeDtypeStruct((rows, N_out), jnp.float32),
        grid_spec=pltpu.PrefetchScalarGridSpec(
            num_scalar_prefetch=0,
            grid=(pl.cdiv(rows, tm),),
            in_specs=in_specs,
            out_specs=pl.BlockSpec((tm, N_out), lambda i: (i, 0)),
        ),
        compiler_params=pltpu.CompilerParams(
            dimension_semantics=("parallel",),
            vmem_limit_bytes=vmem_limit,
        ),
    )(*inputs)

    return out[:M] if rows != M else out


# ----------------------------------------------------------------------------
# Parameter init (mimics nn.Linear default init; weights stored (in, out))
# ----------------------------------------------------------------------------
def init_imgnn_params(key, input_dim, output_dim, mid_num, layer_num):
    dims = [input_dim] + [mid_num] * layer_num
    params = []
    for i in range(layer_num):
        key, kw, kb = jax.random.split(key, 3)
        bound = 1.0 / jnp.sqrt(dims[i])
        w = jax.random.uniform(kw, (dims[i], dims[i + 1]), jnp.float32, -bound, bound)
        b = jax.random.uniform(kb, (dims[i + 1],), jnp.float32, -bound, bound)
        params.append((w, b))
    key, kw = jax.random.split(key)
    bound = 1.0 / jnp.sqrt(mid_num)
    w_last = jax.random.uniform(kw, (mid_num, output_dim), jnp.float32, -bound, bound)
    return params, w_last


def imgnn_forward_ref(x, hidden_params, w_last):
    x = x.astype(jnp.float32)
    for w, b in hidden_params:
        x = jax.nn.relu(x @ w + b)
    y = x @ w_last
    norm = jnp.sqrt(jnp.sum(y * y, axis=1, keepdims=True))
    return y / norm


if __name__ == "__main__":
    # Small shapes consistent with the module (input_dim, mid_num, output_dim shrunk).
    batch, input_dim, mid_num, output_dim, layer_num = 8, 32, 128, 16, 3

    key = jax.random.PRNGKey(0)
    key, kx, kp = jax.random.split(key, 3)
    x = jax.random.normal(kx, (batch, input_dim), jnp.float32)

    hidden_params, w_last = init_imgnn_params(
        kp, input_dim, output_dim, mid_num, layer_num
    )

    ref = imgnn_forward_ref(x, hidden_params, w_last)

    # fp32 compute path: strict check against the fp32 reference.
    out_f32 = jax.block_until_ready(
        imgnn_forward(x, hidden_params, w_last, compute_dtype=jnp.float32)
    )
    assert out_f32.shape == (batch, output_dim)
    assert jnp.allclose(out_f32, ref, atol=1e-5, rtol=1e-5), float(
        jnp.max(jnp.abs(out_f32 - ref))
    )

    # bf16 production path (fp32 accumulate + fp32 epilogue): looser tolerance.
    out_bf16 = jax.block_until_ready(
        imgnn_forward(x, hidden_params, w_last, compute_dtype=jnp.bfloat16)
    )
    assert out_bf16.shape == (batch, output_dim)
    assert jnp.allclose(out_bf16, ref, atol=5e-2, rtol=5e-2), float(
        jnp.max(jnp.abs(out_bf16 - ref))
    )

    print("KERNEL_OK")
</pallas_src>

<mosaic_0001>
module attributes {stable_mosaic.version = 11 : i64} {
  func.func @_imgnn_fused_kernel(%arg0: i32, %arg1: memref<8x32xf32, #tpu.memory_space<vmem>>, %arg2: memref<32x128xf32, #tpu.memory_space<vmem>>, %arg3: memref<1x128xf32, #tpu.memory_space<vmem>>, %arg4: memref<128x128xf32, #tpu.memory_space<vmem>>, %arg5: memref<1x128xf32, #tpu.memory_space<vmem>>, %arg6: memref<128x128xf32, #tpu.memory_space<vmem>>, %arg7: memref<1x128xf32, #tpu.memory_space<vmem>>, %arg8: memref<128x16xf32, #tpu.memory_space<vmem>>, %arg9: memref<8x16xf32, #tpu.memory_space<vmem>>) attributes {dimension_semantics = [#tpu.dimension_semantics<parallel>], iteration_bounds = array<i64: 1>, scalar_prefetch = 0 : i64, scratch_operands = 0 : i64, tpu.core_type = #tpu.core_type<tc>, window_params = [{transform_indices = @transform_0, window_bounds = array<i64: 8, 32>}, {pipeline_mode = #tpu.pipeline_mode<synchronous>, transform_indices = @transform_1, window_bounds = array<i64: 32, 128>}, {pipeline_mode = #tpu.pipeline_mode<synchronous>, transform_indices = @transform_2, window_bounds = array<i64: 1, 128>}, {pipeline_mode = #tpu.pipeline_mode<synchronous>, transform_indices = @transform_3, window_bounds = array<i64: 128, 128>}, {pipeline_mode = #tpu.pipeline_mode<synchronous>, transform_indices = @transform_4, window_bounds = array<i64: 1, 128>}, {pipeline_mode = #tpu.pipeline_mode<synchronous>, transform_indices = @transform_5, window_bounds = array<i64: 128, 128>}, {pipeline_mode = #tpu.pipeline_mode<synchronous>, transform_indices = @transform_6, window_bounds = array<i64: 1, 128>}, {pipeline_mode = #tpu.pipeline_mode<synchronous>, transform_indices = @transform_7, window_bounds = array<i64: 128, 16>}, {transform_indices = @transform_8, window_bounds = array<i64: 8, 16>}]} {
    %c0 = arith.constant 0 : index
    %c0_0 = arith.constant 0 : index
    %0 = vector.load %arg1[%c0, %c0_0] : memref<8x32xf32, #tpu.memory_space<vmem>>, vector<8x32xf32>
    %c0_1 = arith.constant 0 : index
    %c0_2 = arith.constant 0 : index
    %1 = vector.load %arg2[%c0_1, %c0_2] : memref<32x128xf32, #tpu.memory_space<vmem>>, vector<32x128xf32>
    %cst = arith.constant dense<0.000000e+00> : vector<8x128xf32>
    %2 = tpu.matmul %0, %1, %cst {dimension_numbers = #tpu.dot_dimension_numbers<[1], [0], [0], [1], [0, 0, 1, 1], [], []>} : vector<8x32xf32>, vector<32x128xf32>, vector<8x128xf32> -> vector<8x128xf32>
    %c0_3 = arith.constant 0 : index
    %c0_4 = arith.constant 0 : index
    %3 = vector.load %arg3[%c0_3, %c0_4] : memref<1x128xf32, #tpu.memory_space<vmem>>, vector<1x128xf32>
    %4 = vector.broadcast %3 : vector<1x128xf32> to vector<8x128xf32>
    %5 = arith.addf %2, %4 : vector<8x128xf32>
    %cst_5 = arith.constant 0.000000e+00 : f32
    %6 = vector.broadcast %cst_5 : f32 to vector<8x128xf32>
    %7 = arith.maximumf %5, %6 : vector<8x128xf32>
    %c0_6 = arith.constant 0 : index
    %c0_7 = arith.constant 0 : index
    %8 = vector.load %arg4[%c0_6, %c0_7] : memref<128x128xf32, #tpu.memory_space<vmem>>, vector<128x128xf32>
    %cst_8 = arith.constant dense<0.000000e+00> : vector<8x128xf32>
    %9 = tpu.matmul %7, %8, %cst_8 {dimension_numbers = #tpu.dot_dimension_numbers<[1], [0], [0], [1], [0, 0, 1, 1], [], []>} : vector<8x128xf32>, vector<128x128xf32>, vector<8x128xf32> -> vector<8x128xf32>
    %c0_9 = arith.constant 0 : index
    %c0_10 = arith.constant 0 : index
    %10 = vector.load %arg5[%c0_9, %c0_10] : memref<1x128xf32, #tpu.memory_space<vmem>>, vector<1x128xf32>
    %11 = vector.broadcast %10 : vector<1x128xf32> to vector<8x128xf32>
    %12 = arith.addf %9, %11 : vector<8x128xf32>
    %cst_11 = arith.constant 0.000000e+00 : f32
    %13 = vector.broadcast %cst_11 : f32 to vector<8x128xf32>
    %14 = arith.maximumf %12, %13 : vector<8x128xf32>
    %c0_12 = arith.constant 0 : index
    %c0_13 = arith.constant 0 : index
    %15 = vector.load %arg6[%c0_12, %c0_13] : memref<128x128xf32, #tpu.memory_space<vmem>>, vector<128x128xf32>
    %cst_14 = arith.constant dense<0.000000e+00> : vector<8x128xf32>
    %16 = tpu.matmul %14, %15, %cst_14 {dimension_numbers = #tpu.dot_dimension_numbers<[1], [0], [0], [1], [0, 0, 1, 1], [], []>} : vector<8x128xf32>, vector<128x128xf32>, vector<8x128xf32> -> vector<8x128xf32>
    %c0_15 = arith.constant 0 : index
    %c0_16 = arith.constant 0 : index
    %17 = vector.load %arg7[%c0_15, %c0_16] : memref<1x128xf32, #tpu.memory_space<vmem>>, vector<1x128xf32>
    %18 = vector.broadcast %17 : vector<1x128xf32> to vector<8x128xf32>
    %19 = arith.addf %16, %18 : vector<8x128xf32>
    %cst_17 = arith.constant 0.000000e+00 : f32
    %20 = vector.broadcast %cst_17 : f32 to vector<8x128xf32>
    %21 = arith.maximumf %19, %20 : vector<8x128xf32>
    %c0_18 = arith.constant 0 : index
    %c0_19 = arith.constant 0 : index
    %22 = vector.load %arg8[%c0_18, %c0_19] : memref<128x16xf32, #tpu.memory_space<vmem>>, vector<128x16xf32>
    %cst_20 = arith.constant dense<0.000000e+00> : vector<8x16xf32>
    %23 = tpu.matmul %21, %22, %cst_20 {dimension_numbers = #tpu.dot_dimension_numbers<[1], [0], [0], [1], [0, 0, 1, 1], [], []>} : vector<8x128xf32>, vector<128x16xf32>, vector<8x16xf32> -> vector<8x16xf32>
    %24 = arith.mulf %23, %23 : vector<8x16xf32>
    %cst_21 = arith.constant dense<0.000000e+00> : vector<8xf32>
    %25 = vector.multi_reduction <add>, %24, %cst_21 [1] : vector<8x16xf32> to vector<8xf32>
    %26 = vector.shape_cast %25 : vector<8xf32> to vector<8x1xf32>
    %27 = math.rsqrt %26 : vector<8x1xf32>
    %28 = vector.broadcast %27 : vector<8x1xf32> to vector<8x16xf32>
    %29 = arith.mulf %23, %28 : vector<8x16xf32>
    %c0_22 = arith.constant 0 : index
    %c0_23 = arith.constant 0 : index
    %30 = vector.load %arg9[%c0_22, %c0_23] : memref<8x16xf32, #tpu.memory_space<vmem>>, vector<8x16xf32>
    tpu.vector_store %arg9[%c0_22, %c0_23], %29 {strides = array<i32>} : memref<8x16xf32, #tpu.memory_space<vmem>>, vector<8x16xf32>,
    return
  }
  func.func @transform_0(%arg0: i32) -> (i32, i32) {
    %c0_i32 = arith.constant 0 : i32
    %c0_i32_0 = arith.constant 0 : i32
    return %arg0, %c0_i32 : i32, i32
  }
  func.func @transform_1(%arg0: i32) -> (i32, i32) {
    %c0_i32 = arith.constant 0 : i32
    %c0_i32_0 = arith.constant 0 : i32
    %c0_i32_1 = arith.constant 0 : i32
    return %c0_i32, %c0_i32_0 : i32, i32
  }
  func.func @transform_2(%arg0: i32) -> (i32, i32) {
    %c0_i32 = arith.constant 0 : i32
    %c0_i32_0 = arith.constant 0 : i32
    %c0_i32_1 = arith.constant 0 : i32
    return %c0_i32, %c0_i32_0 : i32, i32
  }
  func.func @transform_3(%arg0: i32) -> (i32, i32) {
    %c0_i32 = arith.constant 0 : i32
    %c0_i32_0 = arith.constant 0 : i32
    %c0_i32_1 = arith.constant 0 : i32
    return %c0_i32, %c0_i32_0 : i32, i32
  }
  func.func @transform_4(%arg0: i32) -> (i32, i32) {
    %c0_i32 = arith.constant 0 : i32
    %c0_i32_0 = arith.constant 0 : i32
    %c0_i32_1 = arith.constant 0 : i32
    return %c0_i32, %c0_i32_0 : i32, i32
  }
  func.func @transform_5(%arg0: i32) -> (i32, i32) {
    %c0_i32 = arith.constant 0 : i32
    %c0_i32_0 = arith.constant 0 : i32
    %c0_i32_1 = arith.constant 0 : i32
    return %c0_i32, %c0_i32_0 : i32, i32
  }
  func.func @transform_6(%arg0: i32) -> (i32, i32) {
    %c0_i32 = arith.constant 0 : i32
    %c0_i32_0 = arith.constant 0 : i32
    %c0_i32_1 = arith.constant 0 : i32
    return %c0_i32, %c0_i32_0 : i32, i32
  }
  func.func @transform_7(%arg0: i32) -> (i32, i32) {
    %c0_i32 = arith.constant 0 : i32
    %c0_i32_0 = arith.constant 0 : i32
    %c0_i32_1 = arith.constant 0 : i32
    return %c0_i32, %c0_i32_0 : i32, i32
  }
  func.func @transform_8(%arg0: i32) -> (i32, i32) {
    %c0_i32 = arith.constant 0 : i32
    %c0_i32_0 = arith.constant 0 : i32
    return %arg0, %c0_i32 : i32, i32
  }
}

</mosaic_0001>

<llo_original>
// kernel: tpu_custom_call.1
$region0: #{tpu_custom_call.1}
  #allocation0 [shape = 'u32[]', space=smem, size = 0x4, offset = 0x4, fixed_abs, tag = 'smem constant byte address 0x4 - core index']
  #allocation1 [shape = 'u32[144,128]{1,0:T(1,128)}', space=vmem, size = 0x12000, scoped, tag = 'internal scratch']
  %s0 = inlined_call_operand.vmem [shape: f32[8,32], index: 0, kind: input, shape index: {}]
  %s1 = inlined_call_operand.hbm [shape: f32[32,128], index: 1, kind: input, shape index: {}]
  %s2 = inlined_call_operand.vmem [shape: f32[1,128], index: 2, kind: input, shape index: {}]
  %s3 = inlined_call_operand.vmem [shape: f32[128,128], index: 3, kind: input, shape index: {}]
  %s4 = inlined_call_operand.vmem [shape: f32[1,128], index: 4, kind: input, shape index: {}]
  %s5 = inlined_call_operand.hbm [shape: f32[128,128], index: 5, kind: input, shape index: {}]
  %s6 = inlined_call_operand.vmem [shape: f32[1,128], index: 6, kind: input, shape index: {}]
  %s7 = inlined_call_operand.vmem [shape: f32[128,16], index: 7, kind: input, shape index: {}]
  %s8 = inlined_call_operand.hbm [shape: f32[8,16], index: 8, kind: output, shape index: {}]
  %s9 = sld [smem:[#allocation0]]
  $region50: #{tpu_custom_call.1} parent=0
    _
  %s11 = ssub.s32 1, %s9
  %s12 = scalar_select 0, %s11, %s9
  $region1: #{tpu_custom_call.1} parent=0
    #allocation2 [shape = 'u8[16384]{0}', space=vmem, size = 0x4000, scoped, tag = 'input window, operand 1, single buffered']
    #allocation3 [shape = 's32[1]{0}', space=sflag, size = 0x4, scoped, tag = 'scoped memory for tpu_custom_call.1']
    #allocation4 [shape = 's32[1]{0}', space=sflag, size = 0x4, scoped, tag = 'scoped memory for tpu_custom_call.1']
    #allocation5 [shape = 'u8[65536]{0}', space=vmem, size = 0x10000, scoped, tag = 'input window, operand 5, single buffered']
    #allocation6 [shape = 's32[1]{0}', space=sflag, size = 0x4, scoped, tag = 'scoped memory for tpu_custom_call.1']
    #allocation7 [shape = 'u8[4096]{0}', space=vmem, size = 0x1000, scoped, tag = 'output window, operand 0, single buffered']
    %13 = vsyncpa [#allocation3], 0
    %14 = vsyncpa [#allocation6], 0
    %15 = vsyncpa [#allocation4], 0
    // Predicated region
    $region2: #{tpu_custom_call.1} parent=1 // pred_check
      _
    $region3: #{tpu_custom_call.1} parent=1 // pred_check_branch
      %17 = sbr.rel (0) target = $region5
    $region4: #{tpu_custom_call.1} parent=1 // pred_region
      _
    $region5: #{tpu_custom_call.1} parent=1 // pred_fallthru
      _
    // Predicated region
    $region6: #{tpu_custom_call.1} parent=1 // pred_check
      _
    $region7: #{tpu_custom_call.1} parent=1 // pred_check_branch
      %19 = sbr.rel (0) target = $region9
    $region8: #{tpu_custom_call.1} parent=1 // pred_region
      %s21 = ssub.s32 512, 512
      %22 = vsyncadd [#allocation3], %s21
      %s23 = sshll.u32 [#allocation2], 4
      %s24 = int_to_ptr.vmem [resolvable:$true] %s23
      %29 = dma.hbm_to_vmem [thread:$0]  %s1, 512, %s24, [#allocation3], 128, 128, 8
    $region9: #{tpu_custom_call.1} parent=1 // pred_fallthru
      _
    // Predicated region
    $region10: #{tpu_custom_call.1} parent=1 // pred_check
      _
    $region11: #{tpu_custom_call.1} parent=1 // pred_check_branch
      %31 = sbr.rel (0) target = $region13
    $region12: #{tpu_custom_call.1} parent=1 // pred_region
      _
    $region13: #{tpu_custom_call.1} parent=1 // pred_fallthru
      _
    // Predicated region
    $region14: #{tpu_custom_call.1} parent=1 // pred_check
      _
    $region15: #{tpu_custom_call.1} parent=1 // pred_check_branch
      %33 = sbr.rel (0) target = $region17
    $region16: #{tpu_custom_call.1} parent=1 // pred_region
      _
    $region17: #{tpu_custom_call.1} parent=1 // pred_fallthru
      _
    // Predicated region
    $region18: #{tpu_custom_call.1} parent=1 // pred_check
      _
    $region19: #{tpu_custom_call.1} parent=1 // pred_check_branch
      %35 = sbr.rel (0) target = $region21
    $region20: #{tpu_custom_call.1} parent=1 // pred_region
      _
    $region21: #{tpu_custom_call.1} parent=1 // pred_fallthru
      _
    // Predicated region
    $region22: #{tpu_custom_call.1} parent=1 // pred_check
      _
    $region23: #{tpu_custom_call.1} parent=1 // pred_check_branch
      %37 = sbr.rel (0) target = $region25
    $region24: #{tpu_custom_call.1} parent=1 // pred_region
      %s39 = ssub.s32 2048, 2048
      %40 = vsyncadd [#allocation6], %s39
      %s41 = sshll.u32 [#allocation5], 4
      %s42 = int_to_ptr.vmem [resolvable:$true] %s41
      %47 = dma.hbm_to_vmem [thread:$0]  %s5, 2048, %s42, [#allocation6], 128, 128, 8
    $region25: #{tpu_custom_call.1} parent=1 // pred_fallthru
      _
    // Predicated region
    $region26: #{tpu_custom_call.1} parent=1 // pred_check
      _
    $region27: #{tpu_custom_call.1} parent=1 // pred_check_branch
      %49 = sbr.rel (0) target = $region29
    $region28: #{tpu_custom_call.1} parent=1 // pred_region
      _
    $region29: #{tpu_custom_call.1} parent=1 // pred_fallthru
      _
    // Predicated region
    $region30: #{tpu_custom_call.1} parent=1 // pred_check
      _
    $region31: #{tpu_custom_call.1} parent=1 // pred_check_branch
      %51 = sbr.rel (0) target = $region33
    $region32: #{tpu_custom_call.1} parent=1 // pred_region
      _
    $region33: #{tpu_custom_call.1} parent=1 // pred_fallthru
      _
    // Predicated region
    $region34: #{tpu_custom_call.1} parent=1 // pred_check
      _
    $region35: #{tpu_custom_call.1} parent=1 // pred_check_branch
      %53 = sbr.rel (0) target = $region37
    $region36: #{tpu_custom_call.1} parent=1 // pred_region
      %54 = dma.done [#allocation3], 512
    $region37: #{tpu_custom_call.1} parent=1 // pred_fallthru
      _
    // Predicated region
    $region38: #{tpu_custom_call.1} parent=1 // pred_check
      _
    $region39: #{tpu_custom_call.1} parent=1 // pred_check_branch
      %56 = sbr.rel (0) target = $region41
    $region40: #{tpu_custom_call.1} parent=1 // pred_region
      %57 = dma.done [#allocation6], 2048
    $region41: #{tpu_custom_call.1} parent=1 // pred_fallthru
      _
    %v58 = vld [vmem:[%s0] sm:$0xff]
    %v59 = vld [vmem:[#allocation2] sm:$0xff]
    %v60 = vld [vmem:[#allocation2 + $0x8] sm:$0xff]
    %v61 = vld [vmem:[#allocation2 + $0x10] sm:$0xff]
    %v62 = vld [vmem:[#allocation2 + $0x18] sm:$0xff]
    %v63 = vld [vmem:[%s2] sm:$0x1]
    %v65 = vlaneseq
    %v66 = vshrl.u32 %v65, 7
    %v67 = vsub.s32 0, %v66
    %v68 = vrot.slane %v63, %v67
    %vm70 = vcmask 261120
    %v72 = vsel %vm70, %v58, 0
    %74 = vmatprep.subr.mxu0 0.0
    %75 = vmatpush1.msra.mxu0 %v59
    %76 = vmatprep.subr.mxu0 0.0
    %77 = vmatpush1.msra.mxu0 %v60
    %78 = vmatprep.subr.mxu0 0.0
    %79 = vmatpush1.msra.mxu0 %v61
    %80 = vmatprep.subr.mxu0 0.0
    %81 = vmatpush1.msra.mxu0 %v62
    %82 = vmatprep.subr.mxu0 0.0
    %83 = vmatpush1.msra.mxu0 0.0
    %84 = vmatprep.subr.mxu0 0.0
    %85 = vmatpush1.msra.mxu0 0.0
    %86 = vmatprep.subr.mxu0 0.0
    %87 = vmatpush1.msra.mxu0 0.0
    %88 = vmatprep.subr.mxu0 0.0
    %89 = vmatpush1.msra.mxu0 0.0
    %90 = vmatprep.subr.mxu0 0.0
    %91 = vmatpush1.msra.mxu0 0.0
    %92 = vmatprep.subr.mxu0 0.0
    %93 = vmatpush1.msra.mxu0 0.0
    %94 = vmatprep.subr.mxu0 0.0
    %95 = vmatpush1.msra.mxu0 0.0
    %96 = vmatprep.subr.mxu0 0.0
    %97 = vmatpush1.msra.mxu0 0.0
    %98 = vmatprep.subr.mxu0 0.0
    %99 = vmatpush1.msra.mxu0 0.0
    %100 = vmatprep.subr.mxu0 0.0
    %101 = vmatpush1.msra.mxu0 0.0
    %102 = vmatprep.subr.mxu0 0.0
    %103 = vmatpush1.msra.mxu0 0.0
    %104 = vmatprep.subr.mxu0 0.0
    %105 = vmatpush1.msra.mxu0 0.0
    %106 = vmatprep.subr.mxu0 0.0
    %107 = vmatpush1.msra.mxu0 0.0
    %108 = vmatprep.subr.mxu0 0.0
    %109 = vmatpush1.msra.mxu0 0.0
    %110 = vmatprep.subr.mxu0 0.0
    %111 = vmatpush1.msra.mxu0 0.0
    %112 = vmatprep.subr.mxu0 0.0
    %113 = vmatpush1.msra.mxu0 0.0
    %114 = vmatprep.subr.mxu0 0.0
    %115 = vmatpush1.msra.mxu0 0.0
    %116 = vmatprep.subr.mxu0 0.0
    %117 = vmatpush1.msra.mxu0 0.0
    %118 = vmatprep.subr.mxu0 0.0
    %119 = vmatpush1.msra.mxu0 0.0
    %120 = vmatprep.subr.mxu0 0.0
    %121 = vmatpush1.msra.mxu0 0.0
    %122 = vmatprep.subr.mxu0 0.0
    %123 = vmatpush1.msra.mxu0 0.0
    %124 = vmatprep.subr.mxu0 0.0
    %125 = vmatpush1.msra.mxu0 0.0
    %126 = vmatprep.subr.mxu0 0.0
    %127 = vmatpush1.msra.mxu0 0.0
    %128 = vmatprep.subr.mxu0 0.0
    %129 = vmatpush1.msra.mxu0 0.0
    %130 = vmatprep.subr.mxu0 0.0
    %131 = vmatpush1.msra.mxu0 0.0
    %132 = vmatprep.subr.mxu0 0.0
    %133 = vmatpush1.msra.mxu0 0.0
    %134 = vmatprep.subr.mxu0 0.0
    %135 = vmatpush1.msra.mxu0 0.0
    %136 = vmatprep.subr.mxu0 0.0
    %137 = vmatpush1.msra.mxu0 0.0
    %138 = vmatprep.mubr.f32.mxu0 0.0
    %139 = vmatmul.mubr.f32.gmra.mrb[0].mxu0 %v72
    %v140 = vpop.f32.mrb[0].mxu0
    %v141 = vadd.f32 %v68, %v140
    %v142 = vpop.f32.mrb[0].mxu0
    %143 = vdwg.mxu0
    %v144 = vmax.f32 %v141, 0.0
    %v145 = vld [vmem:[%s3] sm:$0xff]
    %v146 = vld [vmem:[%s3 + $0x8] sm:$0xff]
    %v147 = vld [vmem:[%s3 + $0x10] sm:$0xff]
    %v148 = vld [vmem:[%s3 + $0x18] sm:$0xff]
    %v149 = vld [vmem:[%s3 + $0x20] sm:$0xff]
    %v150 = vld [vmem:[%s3 + $0x28] sm:$0xff]
    %v151 = vld [vmem:[%s3 + $0x30] sm:$0xff]
    %v152 = vld [vmem:[%s3 + $0x38] sm:$0xff]
    %v153 = vld [vmem:[%s3 + $0x40] sm:$0xff]
    %v154 = vld [vmem:[%s3 + $0x48] sm:$0xff]
    %v155 = vld [vmem:[%s3 + $0x50] sm:$0xff]
    %v156 = vld [vmem:[%s3 + $0x58] sm:$0xff]
    %v157 = vld [vmem:[%s3 + $0x60] sm:$0xff]
    %v158 = vld [vmem:[%s3 + $0x68] sm:$0xff]
    %v159 = vld [vmem:[%s3 + $0x70] sm:$0xff]
    %v160 = vld [vmem:[%s3 + $0x78] sm:$0xff]
    %v161 = vld [vmem:[%s4] sm:$0x1]
    %v163 = vlaneseq
    %v164 = vshrl.u32 %v163, 7
    %v165 = vsub.s32 0, %v164
    %v166 = vrot.slane %v161, %v165
    %168 = vmatprep.subr.mxu0 0.0
    %169 = vmatpush1.msra.mxu0 %v145
    %170 = vmatprep.subr.mxu0 0.0
    %171 = vmatpush1.msra.mxu0 %v146
    %172 = vmatprep.subr.mxu0 0.0
    %173 = vmatpush1.msra.mxu0 %v147
    %174 = vmatprep.subr.mxu0 0.0
    %175 = vmatpush1.msra.mxu0 %v148
    %176 = vmatprep.subr.mxu0 0.0
    %177 = vmatpush1.msra.mxu0 %v149
    %178 = vmatprep.subr.mxu0 0.0
    %179 = vmatpush1.msra.mxu0 %v150
    %180 = vmatprep.subr.mxu0 0.0
    %181 = vmatpush1.msra.mxu0 %v151
    %182 = vmatprep.subr.mxu0 0.0
    %183 = vmatpush1.msra.mxu0 %v152
    %184 = vmatprep.subr.mxu0 0.0
    %185 = vmatpush1.msra.mxu0 %v153
    %186 = vmatprep.subr.mxu0 0.0
    %187 = vmatpush1.msra.mxu0 %v154
    %188 = vmatprep.subr.mxu0 0.0
    %189 = vmatpush1.msra.mxu0 %v155
    %190 = vmatprep.subr.mxu0 0.0
    %191 = vmatpush1.msra.mxu0 %v156
    %192 = vmatprep.subr.mxu0 0.0
    %193 = vmatpush1.msra.mxu0 %v157
    %194 = vmatprep.subr.mxu0 0.0
    %195 = vmatpush1.msra.mxu0 %v158
    %196 = vmatprep.subr.mxu0 0.0
    %197 = vmatpush1.msra.mxu0 %v159
    %198 = vmatprep.subr.mxu0 0.0
    %199 = vmatpush1.msra.mxu0 %v160
    %200 = vmatprep.subr.mxu0 0.0
    %201 = vmatpush1.msra.mxu0 0.0
    %202 = vmatprep.subr.mxu0 0.0
    %203 = vmatpush1.msra.mxu0 0.0
    %204 = vmatprep.subr.mxu0 0.0
    %205 = vmatpush1.msra.mxu0 0.0
    %206 = vmatprep.subr.mxu0 0.0
    %207 = vmatpush1.msra.mxu0 0.0
    %208 = vmatprep.subr.mxu0 0.0
    %209 = vmatpush1.msra.mxu0 0.0
    %210 = vmatprep.subr.mxu0 0.0
    %211 = vmatpush1.msra.mxu0 0.0
    %212 = vmatprep.subr.mxu0 0.0
    %213 = vmatpush1.msra.mxu0 0.0
    %214 = vmatprep.subr.mxu0 0.0
    %215 = vmatpush1.msra.mxu0 0.0
    %216 = vmatprep.subr.mxu0 0.0
    %217 = vmatpush1.msra.mxu0 0.0
    %218 = vmatprep.subr.mxu0 0.0
    %219 = vmatpush1.msra.mxu0 0.0
    %220 = vmatprep.subr.mxu0 0.0
    %221 = vmatpush1.msra.mxu0 0.0
    %222 = vmatprep.subr.mxu0 0.0
    %223 = vmatpush1.msra.mxu0 0.0
    %224 = vmatprep.subr.mxu0 0.0
    %225 = vmatpush1.msra.mxu0 0.0
    %226 = vmatprep.subr.mxu0 0.0
    %227 = vmatpush1.msra.mxu0 0.0
    %228 = vmatprep.subr.mxu0 0.0
    %229 = vmatpush1.msra.mxu0 0.0
    %230 = vmatprep.subr.mxu0 0.0
    %231 = vmatpush1.msra.mxu0 0.0
    %232 = vmatprep.mubr.f32.mxu0 0.0
    %233 = vmatmul.mubr.f32.gmra.mrb[0].mxu0 %v144
    %v234 = vpop.f32.mrb[0].mxu0
    %v235 = vadd.f32 %v166, %v234
    %v236 = vpop.f32.mrb[0].mxu0
    %237 = vdwg.mxu0
    %v238 = vmax.f32 %v235, 0.0
    %v239 = vld [vmem:[#allocation5] sm:$0xff]
    %v240 = vld [vmem:[#allocation5 + $0x8] sm:$0xff]
    %v241 = vld [vmem:[#allocation5 + $0x10] sm:$0xff]
    %v242 = vld [vmem:[#allocation5 + $0x18] sm:$0xff]
    %v243 = vld [vmem:[#allocation5 + $0x20] sm:$0xff]
    %v244 = vld [vmem:[#allocation5 + $0x28] sm:$0xff]
    %v245 = vld [vmem:[#allocation5 + $0x30] sm:$0xff]
    %v246 = vld [vmem:[#allocation5 + $0x38] sm:$0xff]
    %v247 = vld [vmem:[#allocation5 + $0x40] sm:$0xff]
    %v248 = vld [vmem:[#allocation5 + $0x48] sm:$0xff]
    %v249 = vld [vmem:[#allocation5 + $0x50] sm:$0xff]
    %v250 = vld [vmem:[#allocation5 + $0x58] sm:$0xff]
    %v251 = vld [vmem:[#allocation5 + $0x60] sm:$0xff]
    %v252 = vld [vmem:[#allocation5 + $0x68] sm:$0xff]
    %v253 = vld [vmem:[#allocation5 + $0x70] sm:$0xff]
    %v254 = vld [vmem:[#allocation5 + $0x78] sm:$0xff]
    %v255 = vld [vmem:[%s6] sm:$0x1]
    %v257 = vlaneseq
    %v258 = vshrl.u32 %v257, 7
    %v259 = vsub.s32 0, %v258
    %v260 = vrot.slane %v255, %v259
    %262 = vmatprep.subr.mxu0 0.0
    %263 = vmatpush1.msra.mxu0 %v239
    %264 = vmatprep.subr.mxu0 0.0
    %265 = vmatpush1.msra.mxu0 %v240
    %266 = vmatprep.subr.mxu0 0.0
    %267 = vmatpush1.msra.mxu0 %v241
    %268 = vmatprep.subr.mxu0 0.0
    %269 = vmatpush1.msra.mxu0 %v242
    %270 = vmatprep.subr.mxu0 0.0
    %271 = vmatpush1.msra.mxu0 %v243
    %272 = vmatprep.subr.mxu0 0.0
    %273 = vmatpush1.msra.mxu0 %v244
    %274 = vmatprep.subr.mxu0 0.0
    %275 = vmatpush1.msra.mxu0 %v245
    %276 = vmatprep.subr.mxu0 0.0
    %277 = vmatpush1.msra.mxu0 %v246
    %278 = vmatprep.subr.mxu0 0.0
    %279 = vmatpush1.msra.mxu0 %v247
    %280 = vmatprep.subr.mxu0 0.0
    %281 = vmatpush1.msra.mxu0 %v248
    %282 = vmatprep.subr.mxu0 0.0
    %283 = vmatpush1.msra.mxu0 %v249
    %284 = vmatprep.subr.mxu0 0.0
    %285 = vmatpush1.msra.mxu0 %v250
    %286 = vmatprep.subr.mxu0 0.0
    %287 = vmatpush1.msra.mxu0 %v251
    %288 = vmatprep.subr.mxu0 0.0
    %289 = vmatpush1.msra.mxu0 %v252
    %290 = vmatprep.subr.mxu0 0.0
    %291 = vmatpush1.msra.mxu0 %v253
    %292 = vmatprep.subr.mxu0 0.0
    %293 = vmatpush1.msra.mxu0 %v254
    %294 = vmatprep.subr.mxu0 0.0
    %295 = vmatpush1.msra.mxu0 0.0
    %296 = vmatprep.subr.mxu0 0.0
    %297 = vmatpush1.msra.mxu0 0.0
    %298 = vmatprep.subr.mxu0 0.0
    %299 = vmatpush1.msra.mxu0 0.0
    %300 = vmatprep.subr.mxu0 0.0
    %301 = vmatpush1.msra.mxu0 0.0
    %302 = vmatprep.subr.mxu0 0.0
    %303 = vmatpush1.msra.mxu0 0.0
    %304 = vmatprep.subr.mxu0 0.0
    %305 = vmatpush1.msra.mxu0 0.0
    %306 = vmatprep.subr.mxu0 0.0
    %307 = vmatpush1.msra.mxu0 0.0
    %308 = vmatprep.subr.mxu0 0.0
    %309 = vmatpush1.msra.mxu0 0.0
    %310 = vmatprep.subr.mxu0 0.0
    %311 = vmatpush1.msra.mxu0 0.0
    %312 = vmatprep.subr.mxu0 0.0
    %313 = vmatpush1.msra.mxu0 0.0
    %314 = vmatprep.subr.mxu0 0.0
    %315 = vmatpush1.msra.mxu0 0.0
    %316 = vmatprep.subr.mxu0 0.0
    %317 = vmatpush1.msra.mxu0 0.0
    %318 = vmatprep.subr.mxu0 0.0
    %319 = vmatpush1.msra.mxu0 0.0
    %320 = vmatprep.subr.mxu0 0.0
    %321 = vmatpush1.msra.mxu0 0.0
    %322 = vmatprep.subr.mxu0 0.0
    %323 = vmatpush1.msra.mxu0 0.0
    %324 = vmatprep.subr.mxu0 0.0
    %325 = vmatpush1.msra.mxu0 0.0
    %326 = vmatprep.mubr.f32.mxu0 0.0
    %327 = vmatmul.mubr.f32.gmra.mrb[0].mxu0 %v238
    %v328 = vpop.f32.mrb[0].mxu0
    %v329 = vadd.f32 %v260, %v328
    %v330 = vpop.f32.mrb[0].mxu0
    %331 = vdwg.mxu0
    %v332 = vmax.f32 %v329, 0.0
    %v333 = vld [vmem:[%s7] sm:$0xff]
    %v334 = vld [vmem:[%s7 + $0x8] sm:$0xff]
    %v335 = vld [vmem:[%s7 + $0x10] sm:$0xff]
    %v336 = vld [vmem:[%s7 + $0x18] sm:$0xff]
    %v337 = vld [vmem:[%s7 + $0x20] sm:$0xff]
    %v338 = vld [vmem:[%s7 + $0x28] sm:$0xff]
    %v339 = vld [vmem:[%s7 + $0x30] sm:$0xff]
    %v340 = vld [vmem:[%s7 + $0x38] sm:$0xff]
    %v341 = vld [vmem:[%s7 + $0x40] sm:$0xff]
    %v342 = vld [vmem:[%s7 + $0x48] sm:$0xff]
    %v343 = vld [vmem:[%s7 + $0x50] sm:$0xff]
    %v344 = vld [vmem:[%s7 + $0x58] sm:$0xff]
    %v345 = vld [vmem:[%s7 + $0x60] sm:$0xff]
    %v346 = vld [vmem:[%s7 + $0x68] sm:$0xff]
    %v347 = vld [vmem:[%s7 + $0x70] sm:$0xff]
    %v348 = vld [vmem:[%s7 + $0x78] sm:$0xff]
    %349 = vmatprep.subr.mxu0 0.0
    %350 = vmatpush1.msra.mxu0 %v333
    %351 = vmatprep.subr.mxu0 0.0
    %352 = vmatpush1.msra.mxu0 %v334
    %353 = vmatprep.subr.mxu0 0.0
    %354 = vmatpush1.msra.mxu0 %v335
    %355 = vmatprep.subr.mxu0 0.0
    %356 = vmatpush1.msra.mxu0 %v336
    %357 = vmatprep.subr.mxu0 0.0
    %358 = vmatpush1.msra.mxu0 %v337
    %359 = vmatprep.subr.mxu0 0.0
    %360 = vmatpush1.msra.mxu0 %v338
    %361 = vmatprep.subr.mxu0 0.0
    %362 = vmatpush1.msra.mxu0 %v339
    %363 = vmatprep.subr.mxu0 0.0
    %364 = vmatpush1.msra.mxu0 %v340
    %365 = vmatprep.subr.mxu0 0.0
    %366 = vmatpush1.msra.mxu0 %v341
    %367 = vmatprep.subr.mxu0 0.0
    %368 = vmatpush1.msra.mxu0 %v342
    %369 = vmatprep.subr.mxu0 0.0
    %370 = vmatpush1.msra.mxu0 %v343
    %371 = vmatprep.subr.mxu0 0.0
    %372 = vmatpush1.msra.mxu0 %v344
    %373 = vmatprep.subr.mxu0 0.0
    %374 = vmatpush1.msra.mxu0 %v345
    %375 = vmatprep.subr.mxu0 0.0
    %376 = vmatpush1.msra.mxu0 %v346
    %377 = vmatprep.subr.mxu0 0.0
    %378 = vmatpush1.msra.mxu0 %v347
    %379 = vmatprep.subr.mxu0 0.0
    %380 = vmatpush1.msra.mxu0 %v348
    %381 = vmatprep.subr.mxu0 0.0
    %382 = vmatpush1.msra.mxu0 0.0
    %383 = vmatprep.subr.mxu0 0.0
    %384 = vmatpush1.msra.mxu0 0.0
    %385 = vmatprep.subr.mxu0 0.0
    %386 = vmatpush1.msra.mxu0 0.0
    %387 = vmatprep.subr.mxu0 0.0
    %388 = vmatpush1.msra.mxu0 0.0
    %389 = vmatprep.subr.mxu0 0.0
    %390 = vmatpush1.msra.mxu0 0.0
    %391 = vmatprep.subr.mxu0 0.0
    %392 = vmatpush1.msra.mxu0 0.0
    %393 = vmatprep.subr.mxu0 0.0
    %394 = vmatpush1.msra.mxu0 0.0
    %395 = vmatprep.subr.mxu0 0.0
    %396 = vmatpush1.msra.mxu0 0.0
    %397 = vmatprep.subr.mxu0 0.0
    %398 = vmatpush1.msra.mxu0 0.0
    %399 = vmatprep.subr.mxu0 0.0
    %400 = vmatpush1.msra.mxu0 0.0
    %401 = vmatprep.subr.mxu0 0.0
    %402 = vmatpush1.msra.mxu0 0.0
    %403 = vmatprep.subr.mxu0 0.0
    %404 = vmatpush1.msra.mxu0 0.0
    %405 = vmatprep.subr.mxu0 0.0
    %406 = vmatpush1.msra.mxu0 0.0
    %407 = vmatprep.subr.mxu0 0.0
    %408 = vmatpush1.msra.mxu0 0.0
    %409 = vmatprep.subr.mxu0 0.0
    %410 = vmatpush1.msra.mxu0 0.0
    %411 = vmatprep.subr.mxu0 0.0
    %412 = vmatpush1.msra.mxu0 0.0
    %413 = vmatprep.mubr.f32.mxu0 0.0
    %414 = vmatmul.mubr.f32.gmra.mrb[0].mxu0 %v332
    %v415 = vpop.f32.mrb[0].mxu0
    %v416 = vadd.f32 0.0, %v415
    %v417 = vpop.f32.mrb[0].mxu0
    %418 = vdwg.mxu0
    %v419 = vmul.f32 %v416, %v416
    %vm420 = vcmask 130048
    %v421 = vsel %vm420, %v419, 0.0
    %422 = vadd.xlane.f32.xlu0 %v421
    %v423 = vpop.xlane.xlu0 %422
    %v424 = vrsqrt.pop %v423
    %v425 = vmul.f32 %v416, %v424
    %426 = vst.msk [vmem:[#allocation7] sm:$0xff] %vm420, %v425
    // Predicated region
    $region42: #{tpu_custom_call.1} parent=1 // pred_check
      _
    $region43: #{tpu_custom_call.1} parent=1 // pred_check_branch
      %428 = sbr.rel (0) target = $region45
    $region44: #{tpu_custom_call.1} parent=1 // pred_region
      %s430 = ssub.s32 128, 128
      %431 = vsyncadd [#allocation4], %s430
      %s433 = sshll.u32 [#allocation7], 4
      %s434 = int_to_ptr.vmem [resolvable:$true] %s433
      %436 = dma.vmem_to_hbm [thread:$0]  %s434, 128, %s8, [#allocation4]
    $region45: #{tpu_custom_call.1} parent=1 // pred_fallthru
      _
    // Predicated region
    $region46: #{tpu_custom_call.1} parent=1 // pred_check
      _
    $region47: #{tpu_custom_call.1} parent=1 // pred_check_branch
      %438 = sbr.rel (0) target = $region49
    $region48: #{tpu_custom_call.1} parent=1 // pred_region
      %439 = dma.done [#allocation4], 128
    $region49: #{tpu_custom_call.1} parent=1 // pred_fallthru
      _
    %440 = vsyncpa [#allocation3], 1
    %441 = vsyncpa [#allocation6], 1
    %442 = vsyncpa [#allocation4], 1

</llo_original>
